<compile_context>
chip_gen: v7x
topology: tpu7x:2x2x1
jax: 0.10.0
libtpu: 0.0.40
codegen_flags: <defaults>
</compile_context>

<pallas_src>
import math

import jax
import jax.numpy as jnp
from jax.experimental import pallas as pl
from jax.experimental.pallas import tpu as pltpu

LANE = 128
SUBLANE = 8


def _round_up(x: int, m: int) -> int:
    return ((x + m - 1) // m) * m


# ----------------------------------------------------------------------------
# Pallas kernel: fused 2-layer MLP with pre-fused condition bias
#   h = relu(theta_tile @ W1_theta + cond_bias_tile)
#   y = h @ W2 + b2
# ----------------------------------------------------------------------------
def _vf_mlp_kernel(theta_ref, condb_ref, w1_ref, w2_ref, b2_ref, o_ref):
    # theta_ref: (TM, d_theta)      row tile of flattened inputs
    # condb_ref: (TM, H_pad)        replicated condition projection (+b1), resident
    # w1_ref   : (d_theta, H_pad)   resident
    # w2_ref   : (H_pad, d_out)     resident
    # b2_ref   : (1, d_out)         resident
    # o_ref    : (TM, d_out)
    x = theta_ref[...]
    h = jnp.dot(x, w1_ref[...], preferred_element_type=jnp.float32)
    h = jnp.maximum(h + condb_ref[...], 0.0)                      # bias + ReLU on VPU
    y = jnp.dot(h, w2_ref[...], preferred_element_type=jnp.float32) + b2_ref[...]
    o_ref[...] = y.astype(o_ref.dtype)


def mlp_vector_field(theta2d, cond_bias_tile, w1_theta, w2, b2, *, tm):
    """theta2d: (M_pad, d_theta) -> (M_pad, d_out) via the fused Pallas MLP."""
    m_pad, d_theta = theta2d.shape
    h_pad = w1_theta.shape[1]
    d_out = w2.shape[1]
    assert m_pad % tm == 0, "row count must be padded to a multiple of the row tile"
    assert cond_bias_tile.shape == (tm, h_pad)

    grid = (m_pad // tm,)

    itemsize = jnp.dtype(theta2d.dtype).itemsize
    flops = 2 * m_pad * (d_theta * h_pad + h_pad * d_out)
    bytes_accessed = (
        m_pad * d_theta * itemsize            # theta read
        + m_pad * d_out * 4                   # output write
        + cond_bias_tile.size * 4
        + w1_theta.size * jnp.dtype(w1_theta.dtype).itemsize
        + w2.size * jnp.dtype(w2.dtype).itemsize
        + b2.size * 4
    )

    return pl.pallas_call(
        _vf_mlp_kernel,
        out_shape=jax.ShapeDtypeStruct((m_pad, d_out), jnp.float32),
        grid_spec=pltpu.PrefetchScalarGridSpec(
            num_scalar_prefetch=0,
            grid=grid,
            in_specs=[
                pl.BlockSpec((tm, d_theta), lambda i: (i, 0)),    # row tile of theta
                pl.BlockSpec((tm, h_pad), lambda i: (0, 0)),      # cond bias (resident)
                pl.BlockSpec((d_theta, h_pad), lambda i: (0, 0)),  # W1_theta (resident)
                pl.BlockSpec((h_pad, d_out), lambda i: (0, 0)),    # W2 (resident)
                pl.BlockSpec((1, d_out), lambda i: (0, 0)),        # b2 (resident)
                # TODO(synk): at production hidden sizes, mark the resident weight
                # specs pipeline_mode=pl.Buffered(1) to halve their VMEM footprint.
            ],
            out_specs=pl.BlockSpec((tm, d_out), lambda i: (i, 0)),
        ),
        compiler_params=pltpu.CompilerParams(
            dimension_semantics=("parallel",),
            # Explicit budget: at tm=2048, double-buffered theta/out/cond-bias tiles
            # plus resident weights stay well under 32 MiB (safe on v5e/v6e/v7x).
            vmem_limit_bytes=32 * 1024 * 1024,
        ),
        cost_estimate=pl.CostEstimate(
            flops=flops, transcendentals=0, bytes_accessed=bytes_accessed
        ),
    )(theta2d, cond_bias_tile, w1_theta, w2, b2)


# ----------------------------------------------------------------------------
# JAX port of the ConditionalVectorFieldEstimator wrapper
# ----------------------------------------------------------------------------
class ConditionalVectorFieldEstimator:
    """Vector field estimator v(theta | x) backed by a fused Pallas MLP kernel.

    input:     (sample_dim, batch_dim, *input_shape)
    condition: (batch_dim, *condition_shape)
    output:    (sample_dim, batch_dim, *input_shape)
    """

    TM_MAX = 2048  # upper bound on the row tile (rows per grid step)

    def __init__(self, input_shape, condition_shape, hidden_dim=32, seed=0,
                 compute_dtype=jnp.float32):
        self._input_shape = tuple(int(s) for s in input_shape)
        self._condition_shape = tuple(int(s) for s in condition_shape)
        self.compute_dtype = compute_dtype  # bf16 recommended on v6e/v7x

        d_theta = int(math.prod(self._input_shape))
        d_cond = int(math.prod(self._condition_shape))
        d_in = d_theta + d_cond
        h_pad = _round_up(hidden_dim, LANE)

        # Deterministic parameter init (synthetic weights, no checkpoint load).
        k = jax.random.PRNGKey(seed)
        k1, k2, k3, k4 = jax.random.split(k, 4)
        w1 = jax.random.normal(k1, (d_in, hidden_dim), jnp.float32) * 0.1
        b1 = jax.random.normal(k2, (1, hidden_dim), jnp.float32) * 0.01
        w2 = jax.random.normal(k3, (hidden_dim, d_theta), jnp.float32) * 0.1
        b2 = jax.random.normal(k4, (1, d_theta), jnp.float32) * 0.01

        # Unpadded copies (reference / "checkpoint" view).
        self.w1, self.b1, self.w2, self.b2 = w1, b1, w2, b2

        # Kernel-side copies: W1 split into theta / condition halves, hidden dim
        # zero-padded to a multiple of 128 lanes (lane-dense intermediate).
        self.w1_theta = jnp.zeros((d_theta, h_pad), jnp.float32).at[:, :hidden_dim].set(
            w1[:d_theta]
        )
        self.w1_cond = jnp.zeros((d_cond, h_pad), jnp.float32).at[:, :hidden_dim].set(
            w1[d_theta:]
        )
        self.b1_pad = jnp.zeros((1, h_pad), jnp.float32).at[:, :hidden_dim].set(b1)
        self.w2_pad = jnp.zeros((h_pad, d_theta), jnp.float32).at[:hidden_dim, :].set(w2)

        self._d_theta = d_theta
        self._d_cond = d_cond
        self._h_pad = h_pad

    # ------------------------------------------------------------------ API
    @property
    def input_shape(self):
        return self._input_shape

    @property
    def condition_shape(self):
        return self._condition_shape

    def _check_condition_shape(self, condition):
        exp = self._condition_shape
        if condition.ndim < len(exp):
            raise ValueError(
                f"Dimensionality of condition is too small; expected at least "
                f"{len(exp)} trailing dims matching {exp}."
            )
        if tuple(condition.shape[-len(exp):]) != exp:
            raise ValueError(
                f"Shape of condition {tuple(condition.shape[-len(exp):])} does not "
                f"match expected condition_shape {exp}."
            )

    def _check_input_shape(self, input):
        exp = self._input_shape
        if input.ndim < len(exp):
            raise ValueError(
                f"Dimensionality of input is too small; expected at least "
                f"{len(exp)} trailing dims matching {exp}."
            )
        if tuple(input.shape[-len(exp):]) != exp:
            raise ValueError(
                f"Shape of input {tuple(input.shape[-len(exp):])} does not match "
                f"expected input_shape {exp}."
            )

    # -------------------------------------------------------------- tiling
    @classmethod
    def _choose_tm(cls, m_rows, batch):
        # Row-tile granularity: multiple of 8 sublanes AND of batch_dim, so every
        # tile starts at batch phase 0 and the replicated cond-bias slab is exact.
        gran = (SUBLANE * batch) // math.gcd(SUBLANE, batch)  # lcm(8, batch)
        if m_rows <= gran:
            return gran
        tm_cap = max(gran, (cls.TM_MAX // gran) * gran)
        # Prefer >= 2 grid steps so both v7x TensorCores get work.
        target = _round_up(max(pl.cdiv(m_rows, 2), 1), gran)
        return min(tm_cap, target)

    # ------------------------------------------------------------- forward
    def forward(self, input, condition):
        self._check_input_shape(input)
        self._check_condition_shape(condition)

        sample_dim, batch_dim = input.shape[0], input.shape[1]
        M = sample_dim * batch_dim

        # Flatten event dims; NO concat and NO sample_dim broadcast of the
        # condition — its projection is folded into a per-tile bias instead.
        theta2d = input.reshape(M, self._d_theta).astype(jnp.float32)
        cond2d = condition.reshape(batch_dim, self._d_cond).astype(jnp.float32)

        # Condition projection + b1, computed once: (batch_dim, H_pad).  Tiny.
        cond_h = cond2d @ self.w1_cond + self.b1_pad

        # Row tile + padding so any M works (padded rows are sliced off below).
        tm = self._choose_tm(M, batch_dim)
        m_pad = _round_up(M, tm)
        if m_pad != M:
            theta2d = jnp.pad(theta2d, ((0, m_pad - M), (0, 0)))

        # Row j of every tile has batch index j % batch_dim (tm % batch_dim == 0),
        # so a single replicated (tm, H_pad) bias slab serves every grid step.
        cond_bias_tile = jnp.tile(cond_h, (tm // batch_dim, 1))

        theta_k = theta2d.astype(self.compute_dtype)
        w1_k = self.w1_theta.astype(self.compute_dtype)
        w2_k = self.w2_pad.astype(self.compute_dtype)

        y2d = mlp_vector_field(theta_k, cond_bias_tile, w1_k, w2_k, self.b2, tm=tm)
        y2d = y2d[:M]
        return y2d.reshape((sample_dim, batch_dim) + self._input_shape)

    __call__ = forward

    # TODO(synk): `loss` (e.g. denoising score-matching loss) is training-only and
    # subclass-specific in sbi; only the forward pass is kernelized here.


# ----------------------------------------------------------------------------
# Reference (pure JAX, concat path with the original unsplit weights)
# ----------------------------------------------------------------------------
def _reference_forward(est, input, condition):
    S, B = input.shape[0], input.shape[1]
    theta = input.reshape(S, B, est._d_theta)
    cond = condition.reshape(B, est._d_cond)
    cond_b = jnp.broadcast_to(cond[None], (S, B, est._d_cond))
    x = jnp.concatenate([theta, cond_b], axis=-1).astype(jnp.float32)
    hp = jax.lax.Precision.HIGHEST
    h = jnp.maximum(jnp.einsum("sbi,ij->sbj", x, est.w1, precision=hp) + est.b1, 0.0)
    y = jnp.einsum("sbh,ho->sbo", h, est.w2, precision=hp) + est.b2
    return y.reshape((S, B) + est._input_shape)


if __name__ == "__main__":
    # Small shapes consistent with the sbi convention:
    #   input:     (sample_dim, batch_dim, *input_shape)   = (8, 4, 8)
    #   condition: (batch_dim, *condition_shape)           = (4, 8)
    sample_dim, batch_dim = 8, 4
    input_shape = (8,)
    condition_shape = (8,)
    hidden_dim = 32

    key = jax.random.PRNGKey(0)
    k_in, k_cond = jax.random.split(key)
    theta = jax.random.normal(k_in, (sample_dim, batch_dim) + input_shape, jnp.float32)
    x_cond = jax.random.normal(k_cond, (batch_dim,) + condition_shape, jnp.float32)

    estimator = ConditionalVectorFieldEstimator(
        input_shape, condition_shape, hidden_dim=hidden_dim, seed=0,
        compute_dtype=jnp.float32,   # use jnp.bfloat16 on v6e/v7x for extra BW
    )

    out = estimator(theta, x_cond)
    out = jax.block_until_ready(out)

    ref = _reference_forward(estimator, theta, x_cond)
    assert out.shape == (sample_dim, batch_dim) + input_shape
    assert jnp.allclose(out, ref, atol=1e-4, rtol=1e-4), "mismatch vs pure-JAX reference"

    print("KERNEL_OK")
</pallas_src>

<mosaic_0001>
module attributes {stable_mosaic.version = 11 : i64} {
  func.func @_vf_mlp_kernel(%arg0: i32, %arg1: memref<16x8xf32, #tpu.memory_space<vmem>>, %arg2: memref<16x128xf32, #tpu.memory_space<vmem>>, %arg3: memref<8x128xf32, #tpu.memory_space<vmem>>, %arg4: memref<128x8xf32, #tpu.memory_space<vmem>>, %arg5: memref<1x8xf32, #tpu.memory_space<vmem>>, %arg6: memref<16x8xf32, #tpu.memory_space<vmem>>) attributes {dimension_semantics = [#tpu.dimension_semantics<parallel>], iteration_bounds = array<i64: 2>, scalar_prefetch = 0 : i64, scratch_operands = 0 : i64, tpu.core_type = #tpu.core_type<tc>, window_params = [{transform_indices = @transform_0, window_bounds = array<i64: 16, 8>}, {pipeline_mode = #tpu.pipeline_mode<synchronous>, transform_indices = @transform_1, window_bounds = array<i64: 16, 128>}, {pipeline_mode = #tpu.pipeline_mode<synchronous>, transform_indices = @transform_2, window_bounds = array<i64: 8, 128>}, {pipeline_mode = #tpu.pipeline_mode<synchronous>, transform_indices = @transform_3, window_bounds = array<i64: 128, 8>}, {pipeline_mode = #tpu.pipeline_mode<synchronous>, transform_indices = @transform_4, window_bounds = array<i64: 1, 8>}, {transform_indices = @transform_5, window_bounds = array<i64: 16, 8>}]} {
    %c0 = arith.constant 0 : index
    %c0_0 = arith.constant 0 : index
    %0 = vector.load %arg1[%c0, %c0_0] : memref<16x8xf32, #tpu.memory_space<vmem>>, vector<16x8xf32>
    %c0_1 = arith.constant 0 : index
    %c0_2 = arith.constant 0 : index
    %1 = vector.load %arg3[%c0_1, %c0_2] : memref<8x128xf32, #tpu.memory_space<vmem>>, vector<8x128xf32>
    %cst = arith.constant dense<0.000000e+00> : vector<16x128xf32>
    %2 = tpu.matmul %0, %1, %cst {dimension_numbers = #tpu.dot_dimension_numbers<[1], [0], [0], [1], [0, 0, 1, 1], [], []>} : vector<16x8xf32>, vector<8x128xf32>, vector<16x128xf32> -> vector<16x128xf32>
    %c0_3 = arith.constant 0 : index
    %c0_4 = arith.constant 0 : index
    %3 = vector.load %arg2[%c0_3, %c0_4] : memref<16x128xf32, #tpu.memory_space<vmem>>, vector<16x128xf32>
    %4 = arith.addf %2, %3 : vector<16x128xf32>
    %cst_5 = arith.constant 0.000000e+00 : f32
    %5 = vector.broadcast %cst_5 : f32 to vector<16x128xf32>
    %6 = arith.maximumf %4, %5 : vector<16x128xf32>
    %c0_6 = arith.constant 0 : index
    %c0_7 = arith.constant 0 : index
    %7 = vector.load %arg4[%c0_6, %c0_7] : memref<128x8xf32, #tpu.memory_space<vmem>>, vector<128x8xf32>
    %cst_8 = arith.constant dense<0.000000e+00> : vector<16x8xf32>
    %8 = tpu.matmul %6, %7, %cst_8 {dimension_numbers = #tpu.dot_dimension_numbers<[1], [0], [0], [1], [0, 0, 1, 1], [], []>} : vector<16x128xf32>, vector<128x8xf32>, vector<16x8xf32> -> vector<16x8xf32>
    %c0_9 = arith.constant 0 : index
    %c0_10 = arith.constant 0 : index
    %9 = vector.load %arg5[%c0_9, %c0_10] : memref<1x8xf32, #tpu.memory_space<vmem>>, vector<1x8xf32>
    %10 = vector.broadcast %9 : vector<1x8xf32> to vector<16x8xf32>
    %11 = arith.addf %8, %10 : vector<16x8xf32>
    %c0_11 = arith.constant 0 : index
    %c0_12 = arith.constant 0 : index
    %12 = vector.load %arg6[%c0_11, %c0_12] : memref<16x8xf32, #tpu.memory_space<vmem>>, vector<16x8xf32>
    tpu.vector_store %arg6[%c0_11, %c0_12], %11 {strides = array<i32>} : memref<16x8xf32, #tpu.memory_space<vmem>>, vector<16x8xf32>,
    return
  }
  func.func @transform_0(%arg0: i32) -> (i32, i32) {
    %c0_i32 = arith.constant 0 : i32
    %c0_i32_0 = arith.constant 0 : i32
    return %arg0, %c0_i32 : i32, i32
  }
  func.func @transform_1(%arg0: i32) -> (i32, i32) {
    %c0_i32 = arith.constant 0 : i32
    %c0_i32_0 = arith.constant 0 : i32
    %c0_i32_1 = arith.constant 0 : i32
    return %c0_i32, %c0_i32_0 : i32, i32
  }
  func.func @transform_2(%arg0: i32) -> (i32, i32) {
    %c0_i32 = arith.constant 0 : i32
    %c0_i32_0 = arith.constant 0 : i32
    %c0_i32_1 = arith.constant 0 : i32
    return %c0_i32, %c0_i32_0 : i32, i32
  }
  func.func @transform_3(%arg0: i32) -> (i32, i32) {
    %c0_i32 = arith.constant 0 : i32
    %c0_i32_0 = arith.constant 0 : i32
    %c0_i32_1 = arith.constant 0 : i32
    return %c0_i32, %c0_i32_0 : i32, i32
  }
  func.func @transform_4(%arg0: i32) -> (i32, i32) {
    %c0_i32 = arith.constant 0 : i32
    %c0_i32_0 = arith.constant 0 : i32
    %c0_i32_1 = arith.constant 0 : i32
    return %c0_i32, %c0_i32_0 : i32, i32
  }
  func.func @transform_5(%arg0: i32) -> (i32, i32) {
    %c0_i32 = arith.constant 0 : i32
    %c0_i32_0 = arith.constant 0 : i32
    return %arg0, %c0_i32 : i32, i32
  }
}

</mosaic_0001>

<llo_original>
// kernel: tpu_custom_call.1
$region0: #{tpu_custom_call.1}
  #allocation0 [shape = 'u32[]', space=smem, size = 0x4, offset = 0x4, fixed_abs, tag = 'smem constant byte address 0x4 - core index']
  #allocation1 [shape = 'u32[144,128]{1,0:T(1,128)}', space=vmem, size = 0x12000, scoped, tag = 'internal scratch']
  %s0 = inlined_call_operand.vmem [shape: f32[32,8], index: 0, kind: input, shape index: {}]
  %s1 = inlined_call_operand.vmem [shape: f32[16,128], index: 1, kind: input, shape index: {}]
  %s2 = inlined_call_operand.vmem [shape: f32[8,128], index: 2, kind: input, shape index: {}]
  %s3 = inlined_call_operand.vmem [shape: f32[128,8], index: 3, kind: input, shape index: {}]
  %s4 = inlined_call_operand.vmem [shape: f32[1,8], index: 4, kind: input, shape index: {}]
  %s5 = inlined_call_operand.vmem [shape: f32[32,8], index: 5, kind: output, shape index: {}]
  %s6 = sld [smem:[#allocation0]]
  $region53: #{tpu_custom_call.1} parent=0
    _
  %s8 = ssub.s32 1, %s6
  %s9 = scalar_select 0, %s8, %s6
  loop: start=0, step=1, limit=4
  $region2: #{tpu_custom_call.1} parent=0 // loop_pre_header
    _
  $region3: #{tpu_custom_call.1} parent=0 // loop_header
    %s11 = sphi 0, %s15
    %p12 = scmp.ge.s32.totalorder %s11, 4
    %s21 = sphi 0, %s23
    %s24 = sphi 0, %s21
    %s25 = sphi 0, %s24
    %s41 = sphi 0, %s25
    %s45 = sphi 0, %s45
    %s47 = sphi 0, %s45
    %s48 = sphi 0, %s47
    %s62 = sphi 0, %s48
    %s66 = sphi 0, %s66
    %s68 = sphi 0, %s66
    %s69 = sphi 0, %s68
    %s83 = sphi 0, %s69
    %s87 = sphi 0, %s87
    %s89 = sphi 0, %s87
    %s90 = sphi 0, %s89
    %s104 = sphi 0, %s90
    %s108 = sphi 0, %s108
    %s110 = sphi 0, %s108
    %s111 = sphi 0, %s110
    %s125 = sphi 0, %s111
    %s131 = sphi 0, %s133
    %s134 = sphi 0, %s131
    %s135 = sphi 0, %s134
    %s151 = sphi 0, %s135
  $region4: #{tpu_custom_call.1} parent=0 // loop_header_branch
    %14 = sbr.rel (%p12) target = $region8
  $region5: #{tpu_custom_call.1} parent=0 // loop_body
    %s16 = ssub.s32 %s11, 1
    %s17 = ssub.s32 %s11, 2
    %s18 = sadd.s32 %s11, 1
    %s19 = ssub.s32 %s11, %s18
    %p20 = scmp.eq.s32.totalorder %s19, 0
    %s22 = sadd.s32 %s21, 1
    %s23 = scalar_select %p20, %s21, %s22
    %p26 = pneg %p20
    %p27 = scmp.eq.s32.totalorder %s11, 1
    %p28 = por %p26, %p27
    %p29 = scmp.ne.s32.totalorder %s21, %s24
    %p30 = scmp.eq.s32.totalorder %s11, 0
    %p31 = por %p29, %p30
    %p32 = scmp.ne.s32.totalorder %s21, %s24
    %p33 = scmp.eq.s32.totalorder %s16, 1
    %p34 = por %p32, %p33
    %p35 = scmp.ne.s32.totalorder %s24, %s25
    %p36 = scmp.eq.s32.totalorder %s16, 0
    %p37 = por %p35, %p36
    %p38 = scmp.ne.s32.totalorder %s24, %s25
    %p39 = scmp.eq.s32.totalorder %s17, 1
    %p40 = por %p38, %p39
    %p42 = scmp.ne.s32.totalorder %s25, %s41
    %p43 = scmp.eq.s32.totalorder %s17, 0
    %p44 = por %p42, %p43
    %s46 = sadd.s32 %s45, 1
    %p49 = scmp.eq.s32.totalorder %s11, 1
    %p50 = scmp.ne.s32.totalorder %s45, %s47
    %p51 = scmp.eq.s32.totalorder %s11, 0
    %p52 = por %p50, %p51
    %p53 = scmp.ne.s32.totalorder %s45, %s47
    %p54 = scmp.eq.s32.totalorder %s16, 1
    %p55 = por %p53, %p54
    %p56 = scmp.ne.s32.totalorder %s47, %s48
    %p57 = scmp.eq.s32.totalorder %s16, 0
    %p58 = por %p56, %p57
    %p59 = scmp.ne.s32.totalorder %s47, %s48
    %p60 = scmp.eq.s32.totalorder %s17, 1
    %p61 = por %p59, %p60
    %p63 = scmp.ne.s32.totalorder %s48, %s62
    %p64 = scmp.eq.s32.totalorder %s17, 0
    %p65 = por %p63, %p64
    %s67 = sadd.s32 %s66, 1
    %p70 = scmp.eq.s32.totalorder %s11, 1
    %p71 = scmp.ne.s32.totalorder %s66, %s68
    %p72 = scmp.eq.s32.totalorder %s11, 0
    %p73 = por %p71, %p72
    %p74 = scmp.ne.s32.totalorder %s66, %s68
    %p75 = scmp.eq.s32.totalorder %s16, 1
    %p76 = por %p74, %p75
    %p77 = scmp.ne.s32.totalorder %s68, %s69
    %p78 = scmp.eq.s32.totalorder %s16, 0
    %p79 = por %p77, %p78
    %p80 = scmp.ne.s32.totalorder %s68, %s69
    %p81 = scmp.eq.s32.totalorder %s17, 1
    %p82 = por %p80, %p81
    %p84 = scmp.ne.s32.totalorder %s69, %s83
    %p85 = scmp.eq.s32.totalorder %s17, 0
    %p86 = por %p84, %p85
    %s88 = sadd.s32 %s87, 1
    %p91 = scmp.eq.s32.totalorder %s11, 1
    %p92 = scmp.ne.s32.totalorder %s87, %s89
    %p93 = scmp.eq.s32.totalorder %s11, 0
    %p94 = por %p92, %p93
    %p95 = scmp.ne.s32.totalorder %s87, %s89
    %p96 = scmp.eq.s32.totalorder %s16, 1
    %p97 = por %p95, %p96
    %p98 = scmp.ne.s32.totalorder %s89, %s90
    %p99 = scmp.eq.s32.totalorder %s16, 0
    %p100 = por %p98, %p99
    %p101 = scmp.ne.s32.totalorder %s89, %s90
    %p102 = scmp.eq.s32.totalorder %s17, 1
    %p103 = por %p101, %p102
    %p105 = scmp.ne.s32.totalorder %s90, %s104
    %p106 = scmp.eq.s32.totalorder %s17, 0
    %p107 = por %p105, %p106
    %s109 = sadd.s32 %s108, 1
    %p112 = scmp.eq.s32.totalorder %s11, 1
    %p113 = scmp.ne.s32.totalorder %s108, %s110
    %p114 = scmp.eq.s32.totalorder %s11, 0
    %p115 = por %p113, %p114
    %p116 = scmp.ne.s32.totalorder %s108, %s110
    %p117 = scmp.eq.s32.totalorder %s16, 1
    %p118 = por %p116, %p117
    %p119 = scmp.ne.s32.totalorder %s110, %s111
    %p120 = scmp.eq.s32.totalorder %s16, 0
    %p121 = por %p119, %p120
    %p122 = scmp.ne.s32.totalorder %s110, %s111
    %p123 = scmp.eq.s32.totalorder %s17, 1
    %p124 = por %p122, %p123
    %p126 = scmp.ne.s32.totalorder %s111, %s125
    %p127 = scmp.eq.s32.totalorder %s17, 0
    %p128 = por %p126, %p127
    %s129 = ssub.s32 %s11, %s18
    %p130 = scmp.eq.s32.totalorder %s129, 0
    %s132 = sadd.s32 %s131, 1
    %s133 = scalar_select %p130, %s131, %s132
    %p136 = pneg %p130
    %p137 = scmp.eq.s32.totalorder %s11, 1
    %p138 = por %p136, %p137
    %p139 = scmp.ne.s32.totalorder %s131, %s134
    %p140 = scmp.eq.s32.totalorder %s11, 0
    %p141 = por %p139, %p140
    %p142 = scmp.ne.s32.totalorder %s131, %s134
    %p143 = scmp.eq.s32.totalorder %s16, 1
    %p144 = por %p142, %p143
    %p145 = scmp.ne.s32.totalorder %s134, %s135
    %p146 = scmp.eq.s32.totalorder %s16, 0
    %p147 = por %p145, %p146
    %p148 = scmp.ne.s32.totalorder %s134, %s135
    %p149 = scmp.eq.s32.totalorder %s17, 1
    %p150 = por %p148, %p149
    %p152 = scmp.ne.s32.totalorder %s135, %s151
    %p153 = scmp.eq.s32.totalorder %s17, 0
    %p154 = por %p152, %p153
    %p155 = scmp.le.s32.totalorder 1, %s11
    %p156 = scmp.lt.s32.totalorder %s11, 3
    %p157 = pnand %p155, %p156
    %p158 = pneg %p157
    // Predicated region
    $region9: #{tpu_custom_call.1} parent=5 // pred_check
      _
    $region10: #{tpu_custom_call.1} parent=5 // pred_check_branch
      %160 = sbr.rel (%p157) target = $region12
    $region11: #{tpu_custom_call.1} parent=5 // pred_region
      %s161 = ssub.s32 %s11, 1
      // Predicated region
      $region13: #{tpu_custom_call.1} parent=11 // pred_check
        %p162 = pneg %p58
      $region14: #{tpu_custom_call.1} parent=11 // pred_check_branch
        %164 = sbr.rel (%p162) target = $region16
      $region15: #{tpu_custom_call.1} parent=11 // pred_region
        _
      $region16: #{tpu_custom_call.1} parent=11 // pred_fallthru
        _
      // Predicated region
      $region17: #{tpu_custom_call.1} parent=11 // pred_check
        %p165 = pneg %p79
      $region18: #{tpu_custom_call.1} parent=11 // pred_check_branch
        %167 = sbr.rel (%p165) target = $region20
      $region19: #{tpu_custom_call.1} parent=11 // pred_region
        _
      $region20: #{tpu_custom_call.1} parent=11 // pred_fallthru
        _
      // Predicated region
      $region21: #{tpu_custom_call.1} parent=11 // pred_check
        %p168 = pneg %p100
      $region22: #{tpu_custom_call.1} parent=11 // pred_check_branch
        %170 = sbr.rel (%p168) target = $region24
      $region23: #{tpu_custom_call.1} parent=11 // pred_region
        _
      $region24: #{tpu_custom_call.1} parent=11 // pred_fallthru
        _
      // Predicated region
      $region25: #{tpu_custom_call.1} parent=11 // pred_check
        %p171 = pneg %p121
      $region26: #{tpu_custom_call.1} parent=11 // pred_check_branch
        %173 = sbr.rel (%p171) target = $region28
      $region27: #{tpu_custom_call.1} parent=11 // pred_region
        _
      $region28: #{tpu_custom_call.1} parent=11 // pred_fallthru
        _
    $region12: #{tpu_custom_call.1} parent=5 // pred_fallthru
      _
    %p174 = scmp.lt.s32.totalorder %s11, 2
    // Predicated region
    $region29: #{tpu_custom_call.1} parent=5 // pred_check
      %p175 = pneg %p174
    $region30: #{tpu_custom_call.1} parent=5 // pred_check_branch
      %177 = sbr.rel (%p175) target = $region32
    $region31: #{tpu_custom_call.1} parent=5 // pred_region
      // Predicated region
      $region33: #{tpu_custom_call.1} parent=31 // pred_check
        %p178 = pneg %p31
      $region34: #{tpu_custom_call.1} parent=31 // pred_check_branch
        %180 = sbr.rel (%p178) target = $region36
      $region35: #{tpu_custom_call.1} parent=31 // pred_region
        %s181 = smul.u32 2, %s11
        %p182 = scmp.lt.s32.totalorder %s181, 3
        %s183 = scalar_select %p182, %s181, 3
        %s184 = smul.addr %s183, 8
        %s185 = scalar_lea.vmem %s0, %s184
        %s186 = smul.u32 2, %s11
      $region36: #{tpu_custom_call.1} parent=31 // pred_fallthru
        _
    $region32: #{tpu_custom_call.1} parent=5 // pred_fallthru
      _
    %p187 = scmp.le.s32.totalorder 1, %s11
    %p188 = scmp.lt.s32.totalorder %s11, 3
    %p189 = pnand %p187, %p188
    %p190 = pneg %p189
    // Predicated region
    $region37: #{tpu_custom_call.1} parent=5 // pred_check
      _
    $region38: #{tpu_custom_call.1} parent=5 // pred_check_branch
      %192 = sbr.rel (%p189) target = $region40
    $region39: #{tpu_custom_call.1} parent=5 // pred_region
      %s193 = ssub.s32 %s11, 1
      %s194 = smul.u32 2, %s16
      %p195 = scmp.lt.s32.totalorder %s194, 3
      %s196 = scalar_select %p195, %s194, 3
      %s197 = smul.addr %s196, 8
      %s198 = scalar_lea.vmem %s0, %s197
      %p199 = pneg %p37
      %p200 = pneg %p34
      %p201 = pneg %p58
      %p202 = pneg %p55
      %p203 = pneg %p79
      %p204 = pneg %p76
      %p205 = pneg %p100
      %p206 = pneg %p97
      %p207 = pneg %p121
      %p208 = pneg %p118
      %p209 = pneg %p147
      %p210 = pneg %p144
      %s211 = smul.u32 2, %s16
      %p212 = scmp.lt.s32.totalorder %s211, 3
      %s213 = scalar_select %p212, %s211, 3
      %s214 = smul.addr %s213, 8
      %s215 = scalar_lea.vmem %s5, %s214
      %s216 = smul.u32 2, %s16
      %p217 = scmp.lt.s32.totalorder %s216, 3
      %s218 = scalar_select %p217, %s216, 3
      %s219 = smul.addr %s218, 8
      %s220 = scalar_lea.vmem %s0, %s219
      %s221 = smul.u32 2, %s16
      %s222 = smul.u32 2, %s16
      %p223 = scmp.lt.s32.totalorder %s222, 3
      %s224 = scalar_select %p223, %s222, 3
      %s225 = smul.addr %s224, 8
      %s226 = scalar_lea.vmem %s5, %s225
      %s227 = smul.u32 2, %s16
      %v228 = vld [vmem:[%s220] sm:$0xff]
      %v229 = vld [vmem:[%s220 + $0x8] sm:$0xff]
      %v230 = vld [vmem:[%s2] sm:$0xff]
      %v231 = vld [vmem:[%s1] sm:$0xff]
      %v232 = vld [vmem:[%s1 + $0x8] sm:$0xff]
      %vm233 = vcmask 64512
      %v235 = vsel %vm233, %v228, 0
      %v238 = vsel %vm233, %v229, 0
      %240 = vmatprep.subr.mxu0 0.0
      %241 = vmatpush1.msra.mxu0 %v230
      %242 = vmatprep.subr.mxu0 0.0
      %243 = vmatpush1.msra.mxu0 0.0
      %244 = vmatprep.subr.mxu0 0.0
      %245 = vmatpush1.msra.mxu0 0.0
      %246 = vmatprep.subr.mxu0 0.0
      %247 = vmatpush1.msra.mxu0 0.0
      %248 = vmatprep.subr.mxu0 0.0
      %249 = vmatpush1.msra.mxu0 0.0
      %250 = vmatprep.subr.mxu0 0.0
      %251 = vmatpush1.msra.mxu0 0.0
      %252 = vmatprep.subr.mxu0 0.0
      %253 = vmatpush1.msra.mxu0 0.0
      %254 = vmatprep.subr.mxu0 0.0
      %255 = vmatpush1.msra.mxu0 0.0
      %256 = vmatprep.subr.mxu0 0.0
      %257 = vmatpush1.msra.mxu0 0.0
      %258 = vmatprep.subr.mxu0 0.0
      %259 = vmatpush1.msra.mxu0 0.0
      %260 = vmatprep.subr.mxu0 0.0
      %261 = vmatpush1.msra.mxu0 0.0
      %262 = vmatprep.subr.mxu0 0.0
      %263 = vmatpush1.msra.mxu0 0.0
      %264 = vmatprep.subr.mxu0 0.0
      %265 = vmatpush1.msra.mxu0 0.0
      %266 = vmatprep.subr.mxu0 0.0
      %267 = vmatpush1.msra.mxu0 0.0
      %268 = vmatprep.subr.mxu0 0.0
      %269 = vmatpush1.msra.mxu0 0.0
      %270 = vmatprep.subr.mxu0 0.0
      %271 = vmatpush1.msra.mxu0 0.0
      %272 = vmatprep.subr.mxu0 0.0
      %273 = vmatpush1.msra.mxu0 0.0
      %274 = vmatprep.subr.mxu0 0.0
      %275 = vmatpush1.msra.mxu0 0.0
      %276 = vmatprep.subr.mxu0 0.0
      %277 = vmatpush1.msra.mxu0 0.0
      %278 = vmatprep.subr.mxu0 0.0
      %279 = vmatpush1.msra.mxu0 0.0
      %280 = vmatprep.subr.mxu0 0.0
      %281 = vmatpush1.msra.mxu0 0.0
      %282 = vmatprep.subr.mxu0 0.0
      %283 = vmatpush1.msra.mxu0 0.0
      %284 = vmatprep.subr.mxu0 0.0
      %285 = vmatpush1.msra.mxu0 0.0
      %286 = vmatprep.subr.mxu0 0.0
      %287 = vmatpush1.msra.mxu0 0.0
      %288 = vmatprep.subr.mxu0 0.0
      %289 = vmatpush1.msra.mxu0 0.0
      %290 = vmatprep.subr.mxu0 0.0
      %291 = vmatpush1.msra.mxu0 0.0
      %292 = vmatprep.subr.mxu0 0.0
      %293 = vmatpush1.msra.mxu0 0.0
      %294 = vmatprep.subr.mxu0 0.0
      %295 = vmatpush1.msra.mxu0 0.0
      %296 = vmatprep.subr.mxu0 0.0
      %297 = vmatpush1.msra.mxu0 0.0
      %298 = vmatprep.subr.mxu0 0.0
      %299 = vmatpush1.msra.mxu0 0.0
      %300 = vmatprep.subr.mxu0 0.0
      %301 = vmatpush1.msra.mxu0 0.0
      %302 = vmatprep.subr.mxu0 0.0
      %303 = vmatpush1.msra.mxu0 0.0
      %304 = vmatprep.mubr.f32.mxu0 0.0
      %305 = vmatmul.mubr.f32.gmra.mrb[0].mxu0 %v235
      %v306 = vpop.f32.mrb[0].mxu0
      %v307 = vadd.f32 %v231, %v306
      %v308 = vpop.f32.mrb[0].mxu0
      %309 = vmatprep.mubr.f32.mxu0 0.0
      %310 = vmatmul.mubr.f32.gmra.mrb[0].mxu0 %v238
      %v311 = vpop.f32.mrb[0].mxu0
      %v312 = vadd.f32 %v232, %v311
      %v313 = vpop.f32.mrb[0].mxu0
      %314 = vdwg.mxu0
      %v315 = vmax.f32 %v307, 0.0
      %v316 = vmax.f32 %v312, 0.0
      %v317 = vld [vmem:[%s3] sm:$0xff]
      %v318 = vld [vmem:[%s3 + $0x8] sm:$0xff]
      %v319 = vld [vmem:[%s3 + $0x10] sm:$0xff]
      %v320 = vld [vmem:[%s3 + $0x18] sm:$0xff]
      %v321 = vld [vmem:[%s3 + $0x20] sm:$0xff]
      %v322 = vld [vmem:[%s3 + $0x28] sm:$0xff]
      %v323 = vld [vmem:[%s3 + $0x30] sm:$0xff]
      %v324 = vld [vmem:[%s3 + $0x38] sm:$0xff]
      %v325 = vld [vmem:[%s3 + $0x40] sm:$0xff]
      %v326 = vld [vmem:[%s3 + $0x48] sm:$0xff]
      %v327 = vld [vmem:[%s3 + $0x50] sm:$0xff]
      %v328 = vld [vmem:[%s3 + $0x58] sm:$0xff]
      %v329 = vld [vmem:[%s3 + $0x60] sm:$0xff]
      %v330 = vld [vmem:[%s3 + $0x68] sm:$0xff]
      %v331 = vld [vmem:[%s3 + $0x70] sm:$0xff]
      %v332 = vld [vmem:[%s3 + $0x78] sm:$0xff]
      %v333 = vld [vmem:[%s4] sm:$0x1]
      %v335 = vlaneseq
      %v336 = vshrl.u32 %v335, 7
      %v337 = vsub.s32 0, %v336
      %v338 = vrot.slane %v333, %v337
      %340 = vmatprep.subr.mxu0 0.0
      %341 = vmatpush1.msra.mxu0 %v317
      %342 = vmatprep.subr.mxu0 0.0
      %343 = vmatpush1.msra.mxu0 %v318
      %344 = vmatprep.subr.mxu0 0.0
      %345 = vmatpush1.msra.mxu0 %v319
      %346 = vmatprep.subr.mxu0 0.0
      %347 = vmatpush1.msra.mxu0 %v320
      %348 = vmatprep.subr.mxu0 0.0
      %349 = vmatpush1.msra.mxu0 %v321
      %350 = vmatprep.subr.mxu0 0.0
      %351 = vmatpush1.msra.mxu0 %v322
      %352 = vmatprep.subr.mxu0 0.0
      %353 = vmatpush1.msra.mxu0 %v323
      %354 = vmatprep.subr.mxu0 0.0
      %355 = vmatpush1.msra.mxu0 %v324
      %356 = vmatprep.subr.mxu0 0.0
      %357 = vmatpush1.msra.mxu0 %v325
      %358 = vmatprep.subr.mxu0 0.0
      %359 = vmatpush1.msra.mxu0 %v326
      %360 = vmatprep.subr.mxu0 0.0
      %361 = vmatpush1.msra.mxu0 %v327
      %362 = vmatprep.subr.mxu0 0.0
      %363 = vmatpush1.msra.mxu0 %v328
      %364 = vmatprep.subr.mxu0 0.0
      %365 = vmatpush1.msra.mxu0 %v329
      %366 = vmatprep.subr.mxu0 0.0
      %367 = vmatpush1.msra.mxu0 %v330
      %368 = vmatprep.subr.mxu0 0.0
      %369 = vmatpush1.msra.mxu0 %v331
      %370 = vmatprep.subr.mxu0 0.0
      %371 = vmatpush1.msra.mxu0 %v332
      %372 = vmatprep.subr.mxu0 0.0
      %373 = vmatpush1.msra.mxu0 0.0
      %374 = vmatprep.subr.mxu0 0.0
      %375 = vmatpush1.msra.mxu0 0.0
      %376 = vmatprep.subr.mxu0 0.0
      %377 = vmatpush1.msra.mxu0 0.0
      %378 = vmatprep.subr.mxu0 0.0
      %379 = vmatpush1.msra.mxu0 0.0
      %380 = vmatprep.subr.mxu0 0.0
      %381 = vmatpush1.msra.mxu0 0.0
      %382 = vmatprep.subr.mxu0 0.0
      %383 = vmatpush1.msra.mxu0 0.0
      %384 = vmatprep.subr.mxu0 0.0
      %385 = vmatpush1.msra.mxu0 0.0
      %386 = vmatprep.subr.mxu0 0.0
      %387 = vmatpush1.msra.mxu0 0.0
      %388 = vmatprep.subr.mxu0 0.0
      %389 = vmatpush1.msra.mxu0 0.0
      %390 = vmatprep.subr.mxu0 0.0
      %391 = vmatpush1.msra.mxu0 0.0
      %392 = vmatprep.subr.mxu0 0.0
      %393 = vmatpush1.msra.mxu0 0.0
      %394 = vmatprep.subr.mxu0 0.0
      %395 = vmatpush1.msra.mxu0 0.0
      %396 = vmatprep.subr.mxu0 0.0
      %397 = vmatpush1.msra.mxu0 0.0
      %398 = vmatprep.subr.mxu0 0.0
      %399 = vmatpush1.msra.mxu0 0.0
      %400 = vmatprep.subr.mxu0 0.0
      %401 = vmatpush1.msra.mxu0 0.0
      %402 = vmatprep.subr.mxu0 0.0
      %403 = vmatpush1.msra.mxu0 0.0
      %404 = vmatprep.mubr.f32.mxu0 0.0
      %405 = vmatmul.mubr.f32.gmra.mrb[0].mxu0 %v315
      %v406 = vpop.f32.mrb[0].mxu0
      %v407 = vadd.f32 %v338, %v406
      %v408 = vpop.f32.mrb[0].mxu0
      %409 = vmatprep.mubr.f32.mxu0 0.0
      %410 = vmatmul.mubr.f32.gmra.mrb[0].mxu0 %v316
      %v411 = vpop.f32.mrb[0].mxu0
      %v412 = vadd.f32 %v338, %v411
      %v413 = vpop.f32.mrb[0].mxu0
      %414 = vdwg.mxu0
      %415 = vst.msk [vmem:[%s226] sm:$0xff] %vm233, %v407
      %416 = vst.msk [vmem:[%s226 + $0x8] sm:$0xff] %vm233, %v412
      %s417 = smul.u32 2, %s16
      %p418 = scmp.lt.s32.totalorder %s417, 3
      %s419 = scalar_select %p418, %s417, 3
      %s420 = smul.addr %s419, 8
      %s421 = scalar_lea.vmem %s5, %s420
      // Predicated region
      $region41: #{tpu_custom_call.1} parent=39 // pred_check
        %p422 = pneg %p144
      $region42: #{tpu_custom_call.1} parent=39 // pred_check_branch
        %424 = sbr.rel (%p422) target = $region44
      $region43: #{tpu_custom_call.1} parent=39 // pred_region
        %s425 = smul.u32 2, %s16
      $region44: #{tpu_custom_call.1} parent=39 // pred_fallthru
        _
    $region40: #{tpu_custom_call.1} parent=5 // pred_fallthru
      _
    %p426 = scmp.le.s32.totalorder 2, %s11
    // Predicated region
    $region45: #{tpu_custom_call.1} parent=5 // pred_check
      %p427 = pneg %p426
    $region46: #{tpu_custom_call.1} parent=5 // pred_check_branch
      %429 = sbr.rel (%p427) target = $region48
    $region47: #{tpu_custom_call.1} parent=5 // pred_region
      %s430 = ssub.s32 %s11, 2
      // Predicated region
      $region49: #{tpu_custom_call.1} parent=47 // pred_check
        %p431 = pneg %p150
      $region50: #{tpu_custom_call.1} parent=47 // pred_check_branch
        %433 = sbr.rel (%p431) target = $region52
      $region51: #{tpu_custom_call.1} parent=47 // pred_region
        %s434 = smul.u32 2, %s17
        %p435 = scmp.lt.s32.totalorder %s434, 3
        %s436 = scalar_select %p435, %s434, 3
        %s437 = smul.addr %s436, 8
        %s438 = scalar_lea.vmem %s5, %s437
      $region52: #{tpu_custom_call.1} parent=47 // pred_fallthru
        _
    $region48: #{tpu_custom_call.1} parent=5 // pred_fallthru
      _
  $region6: #{tpu_custom_call.1} parent=0 // loop_footer
    %s15 = sadd.s32 1, %s11
  $region7: #{tpu_custom_call.1} parent=0 // loop_footer_branch
    %10 = sbr.rel target = $region3
  $region8: #{tpu_custom_call.1} parent=0 // loop_exit
    _

</llo_original>
